<compile_context>
chip_gen: v7x
topology: tpu7x:2x2x1
jax: 0.10.0
libtpu: 0.0.40
codegen_flags: <defaults>
</compile_context>

<pallas_src>
import functools

import jax
import jax.numpy as jnp
from jax import lax
from jax.experimental import pallas as pl
from jax.experimental.pallas import tpu as pltpu


def mlp_kernel(x_ref, *refs, n_hidden):
    """x_ref: [in_dim, T] (batch on lanes). Weights in PyTorch [out_f, in_f] layout."""
    if n_hidden > 0:
        (w_in_ref, b_in_ref, w_h_ref, b_h_ref,
         w_out_ref, b_out_ref, out_ref) = refs
    else:
        w_in_ref, b_in_ref, w_out_ref, b_out_ref, out_ref = refs
        w_h_ref = b_h_ref = None

    # Input layer: tanh(W_in @ x_T + b_in)  ->  [W, T]
    h = jnp.tanh(
        jnp.dot(w_in_ref[...], x_ref[...], preferred_element_type=jnp.float32)
        + b_in_ref[...]                      # [W, 1] broadcasts over lanes
    )

    # Hidden layers: tanh(W_h[i] @ h + b_h[i]) -> [W, T].
    # Small static depth -> unrolled; deep nets -> fori_loop so only one layer's
    # weights are live at a time (bounds vreg pressure / code size).
    if n_hidden > 0:
        if n_hidden <= 8:
            for i in range(n_hidden):
                h = jnp.tanh(
                    jnp.dot(w_h_ref[i], h, preferred_element_type=jnp.float32)
                    + b_h_ref[i]             # [W, 1], 2-D bias read
                )
        else:
            def body(i, h):
                return jnp.tanh(
                    jnp.dot(w_h_ref[i], h, preferred_element_type=jnp.float32)
                    + b_h_ref[i]
                )
            h = lax.fori_loop(0, n_hidden, body, h)

    # Output layer: [out_dim, W] @ [W, T] + [out_dim, 1] -> lane-dense [out_dim, T]
    out_ref[...] = (
        jnp.dot(w_out_ref[...], h, preferred_element_type=jnp.float32)
        + b_out_ref[...]
    )


def _round_up(n, m):
    return ((n + m - 1) // m) * m


@functools.partial(jax.jit, static_argnames=("n_hidden", "batch_tile"))
def mlp_forward(x, w_in, b_in, w_h, b_h, w_out, b_out, *, n_hidden,
                batch_tile=2048):
    batch, in_dim = x.shape
    out_dim = w_out.shape[0]

    # Batch tile: multiple of 128 lanes, no larger than the padded batch.
    tile = min(_round_up(batch_tile, 128), _round_up(batch, 128))
    padded = _round_up(batch, tile)
    grid = (padded // tile,)

    # Layout plumbing in the XLA wrapper: put batch on the lane axis.
    x_t = jnp.pad(x, ((0, padded - batch), (0, 0))).T        # [in_dim, padded]

    def resident(shape):
        # Full-array block whose block index never changes -> stays in VMEM
        # across every grid step (weights/biases loaded once).
        return pl.BlockSpec(shape, lambda i: (0,) * len(shape))

    in_specs = [pl.BlockSpec((in_dim, tile), lambda i: (0, i)),
                resident(w_in.shape), resident(b_in.shape)]
    args = [x_t, w_in, b_in]
    if n_hidden > 0:
        in_specs += [resident(w_h.shape), resident(b_h.shape)]
        args += [w_h, b_h]
    in_specs += [resident(w_out.shape), resident(b_out.shape)]
    args += [w_out, b_out]

    out_t = pl.pallas_call(
        functools.partial(mlp_kernel, n_hidden=n_hidden),
        out_shape=jax.ShapeDtypeStruct((out_dim, padded), jnp.float32),
        grid=grid,
        in_specs=in_specs,
        out_specs=pl.BlockSpec((out_dim, tile), lambda i: (0, i)),
        compiler_params=pltpu.CompilerParams(
            dimension_semantics=("parallel",)),   # megacore sharding on v7x
    )(*args)

    return out_t.T[:batch]                                   # [batch, out_dim]


def init_params(key, network_depth, layer_width, in_dim=4, out_dim=1):
    """He (kaiming_normal_, fan_in mode, gain=sqrt(2)) init, bias = 0.01.

    Weights are stored in the PyTorch Linear layout [out_features, in_features],
    which is exactly what the batch-on-lanes kernel consumes. Biases are [out, 1]."""
    n_hidden = network_depth - 2
    keys = jax.random.split(key, 2 + max(n_hidden, 0))

    def he(k, fan_out, fan_in):
        std = jnp.sqrt(2.0 / fan_in)
        return jax.random.normal(k, (fan_out, fan_in), dtype=jnp.float32) * std

    w_in = he(keys[0], layer_width, in_dim)                      # [W, 4]
    b_in = jnp.full((layer_width, 1), 0.01, dtype=jnp.float32)   # [W, 1]

    if n_hidden > 0:
        w_h = jnp.stack([he(keys[1 + i], layer_width, layer_width)
                         for i in range(n_hidden)], axis=0)      # [H, W, W]
        b_h = jnp.full((n_hidden, layer_width, 1), 0.01, dtype=jnp.float32)
    else:
        w_h = None   # never DMA'd / allocated when there are no hidden layers
        b_h = None

    w_out = he(keys[-1], out_dim, layer_width)                   # [1, W]
    b_out = jnp.full((out_dim, 1), 0.01, dtype=jnp.float32)      # [1, 1]
    return dict(w_in=w_in, b_in=b_in, w_h=w_h, b_h=b_h,
                w_out=w_out, b_out=b_out, n_hidden=n_hidden)


def reference_forward(x, p):
    h = jnp.tanh(x @ p["w_in"].T + p["b_in"][:, 0])
    for i in range(p["n_hidden"]):
        h = jnp.tanh(h @ p["w_h"][i].T + p["b_h"][i, :, 0])
    return h @ p["w_out"].T + p["b_out"][:, 0]


if __name__ == "__main__":
    network_depth = 4     # => 2 hidden layers
    layer_width = 32
    batch = 8

    key = jax.random.PRNGKey(0)
    k_x, k_p = jax.random.split(key)
    x = jax.random.normal(k_x, (batch, 4), dtype=jnp.float32)
    p = init_params(k_p, network_depth, layer_width)

    out = mlp_forward(x, p["w_in"], p["b_in"], p["w_h"], p["b_h"],
                      p["w_out"], p["b_out"], n_hidden=p["n_hidden"])
    out = jax.block_until_ready(out)

    ref = reference_forward(x, p)
    assert out.shape == (batch, 1)
    assert jnp.allclose(out, ref, atol=1e-5, rtol=1e-5)
    print("KERNEL_OK")
</pallas_src>

<mosaic_0001>
module attributes {stable_mosaic.version = 11 : i64} {
  func.func @mlp_kernel(%arg0: i32, %arg1: memref<4x128xf32, #tpu.memory_space<vmem>>, %arg2: memref<32x4xf32, #tpu.memory_space<vmem>>, %arg3: memref<32x1xf32, #tpu.memory_space<vmem>>, %arg4: memref<2x32x32xf32, #tpu.memory_space<vmem>>, %arg5: memref<2x32x1xf32, #tpu.memory_space<vmem>>, %arg6: memref<1x32xf32, #tpu.memory_space<vmem>>, %arg7: memref<1x1xf32, #tpu.memory_space<vmem>>, %arg8: memref<1x128xf32, #tpu.memory_space<vmem>>) attributes {dimension_semantics = [#tpu.dimension_semantics<parallel>], iteration_bounds = array<i64: 1>, scalar_prefetch = 0 : i64, scratch_operands = 0 : i64, tpu.core_type = #tpu.core_type<tc>, window_params = [{transform_indices = @transform_0, window_bounds = array<i64: 4, 128>}, {pipeline_mode = #tpu.pipeline_mode<synchronous>, transform_indices = @transform_1, window_bounds = array<i64: 32, 4>}, {pipeline_mode = #tpu.pipeline_mode<synchronous>, transform_indices = @transform_2, window_bounds = array<i64: 32, 1>}, {pipeline_mode = #tpu.pipeline_mode<synchronous>, transform_indices = @transform_3, window_bounds = array<i64: 2, 32, 32>}, {pipeline_mode = #tpu.pipeline_mode<synchronous>, transform_indices = @transform_4, window_bounds = array<i64: 2, 32, 1>}, {pipeline_mode = #tpu.pipeline_mode<synchronous>, transform_indices = @transform_5, window_bounds = array<i64: 1, 32>}, {pipeline_mode = #tpu.pipeline_mode<synchronous>, transform_indices = @transform_6, window_bounds = array<i64: 1, 1>}, {transform_indices = @transform_7, window_bounds = array<i64: 1, 128>}]} {
    %c0 = arith.constant 0 : index
    %c0_0 = arith.constant 0 : index
    %0 = vector.load %arg2[%c0, %c0_0] : memref<32x4xf32, #tpu.memory_space<vmem>>, vector<32x4xf32>
    %c0_1 = arith.constant 0 : index
    %c0_2 = arith.constant 0 : index
    %1 = vector.load %arg1[%c0_1, %c0_2] : memref<4x128xf32, #tpu.memory_space<vmem>>, vector<4x128xf32>
    %cst = arith.constant dense<0.000000e+00> : vector<32x128xf32>
    %2 = tpu.matmul %0, %1, %cst {dimension_numbers = #tpu.dot_dimension_numbers<[1], [0], [0], [1], [0, 0, 1, 1], [], []>} : vector<32x4xf32>, vector<4x128xf32>, vector<32x128xf32> -> vector<32x128xf32>
    %c0_3 = arith.constant 0 : index
    %c0_4 = arith.constant 0 : index
    %3 = vector.load %arg3[%c0_3, %c0_4] : memref<32x1xf32, #tpu.memory_space<vmem>>, vector<32x1xf32>
    %4 = vector.broadcast %3 : vector<32x1xf32> to vector<32x128xf32>
    %5 = arith.addf %2, %4 : vector<32x128xf32>
    %6 = math.tanh %5 : vector<32x128xf32>
    %c0_5 = arith.constant 0 : index
    %c0_6 = arith.constant 0 : index
    %c0_7 = arith.constant 0 : index
    %7 = vector.load %arg4[%c0_5, %c0_6, %c0_7] : memref<2x32x32xf32, #tpu.memory_space<vmem>>, vector<1x32x32xf32>
    %8 = vector.shape_cast %7 : vector<1x32x32xf32> to vector<32x32xf32>
    %cst_8 = arith.constant dense<0.000000e+00> : vector<32x128xf32>
    %9 = tpu.matmul %8, %6, %cst_8 {dimension_numbers = #tpu.dot_dimension_numbers<[1], [0], [0], [1], [0, 0, 1, 1], [], []>} : vector<32x32xf32>, vector<32x128xf32>, vector<32x128xf32> -> vector<32x128xf32>
    %c0_9 = arith.constant 0 : index
    %c0_10 = arith.constant 0 : index
    %c0_11 = arith.constant 0 : index
    %10 = vector.load %arg5[%c0_9, %c0_10, %c0_11] : memref<2x32x1xf32, #tpu.memory_space<vmem>>, vector<1x32x1xf32>
    %11 = vector.shape_cast %10 : vector<1x32x1xf32> to vector<32x1xf32>
    %12 = vector.broadcast %11 : vector<32x1xf32> to vector<32x128xf32>
    %13 = arith.addf %9, %12 : vector<32x128xf32>
    %14 = math.tanh %13 : vector<32x128xf32>
    %c1 = arith.constant 1 : index
    %c0_12 = arith.constant 0 : index
    %c0_13 = arith.constant 0 : index
    %15 = vector.load %arg4[%c1, %c0_12, %c0_13] : memref<2x32x32xf32, #tpu.memory_space<vmem>>, vector<1x32x32xf32>
    %16 = vector.shape_cast %15 : vector<1x32x32xf32> to vector<32x32xf32>
    %cst_14 = arith.constant dense<0.000000e+00> : vector<32x128xf32>
    %17 = tpu.matmul %16, %14, %cst_14 {dimension_numbers = #tpu.dot_dimension_numbers<[1], [0], [0], [1], [0, 0, 1, 1], [], []>} : vector<32x32xf32>, vector<32x128xf32>, vector<32x128xf32> -> vector<32x128xf32>
    %c1_15 = arith.constant 1 : index
    %c0_16 = arith.constant 0 : index
    %c0_17 = arith.constant 0 : index
    %18 = vector.load %arg5[%c1_15, %c0_16, %c0_17] : memref<2x32x1xf32, #tpu.memory_space<vmem>>, vector<1x32x1xf32>
    %19 = vector.shape_cast %18 : vector<1x32x1xf32> to vector<32x1xf32>
    %20 = vector.broadcast %19 : vector<32x1xf32> to vector<32x128xf32>
    %21 = arith.addf %17, %20 : vector<32x128xf32>
    %22 = math.tanh %21 : vector<32x128xf32>
    %c0_18 = arith.constant 0 : index
    %c0_19 = arith.constant 0 : index
    %23 = vector.load %arg6[%c0_18, %c0_19] : memref<1x32xf32, #tpu.memory_space<vmem>>, vector<1x32xf32>
    %cst_20 = arith.constant dense<0.000000e+00> : vector<1x128xf32>
    %24 = tpu.matmul %23, %22, %cst_20 {dimension_numbers = #tpu.dot_dimension_numbers<[1], [0], [0], [1], [0, 0, 1, 1], [], []>} : vector<1x32xf32>, vector<32x128xf32>, vector<1x128xf32> -> vector<1x128xf32>
    %c0_21 = arith.constant 0 : index
    %c0_22 = arith.constant 0 : index
    %25 = vector.load %arg7[%c0_21, %c0_22] : memref<1x1xf32, #tpu.memory_space<vmem>>, vector<1x1xf32>
    %26 = vector.broadcast %25 : vector<1x1xf32> to vector<1x128xf32>
    %27 = arith.addf %24, %26 : vector<1x128xf32>
    %c0_23 = arith.constant 0 : index
    %c0_24 = arith.constant 0 : index
    %28 = vector.load %arg8[%c0_23, %c0_24] : memref<1x128xf32, #tpu.memory_space<vmem>>, vector<1x128xf32>
    tpu.vector_store %arg8[%c0_23, %c0_24], %27 {strides = array<i32>} : memref<1x128xf32, #tpu.memory_space<vmem>>, vector<1x128xf32>,
    return
  }
  func.func @transform_0(%arg0: i32) -> (i32, i32) {
    %c0_i32 = arith.constant 0 : i32
    %c0_i32_0 = arith.constant 0 : i32
    return %c0_i32, %arg0 : i32, i32
  }
  func.func @transform_1(%arg0: i32) -> (i32, i32) {
    %c0_i32 = arith.constant 0 : i32
    %c0_i32_0 = arith.constant 0 : i32
    %c0_i32_1 = arith.constant 0 : i32
    return %c0_i32, %c0_i32_0 : i32, i32
  }
  func.func @transform_2(%arg0: i32) -> (i32, i32) {
    %c0_i32 = arith.constant 0 : i32
    %c0_i32_0 = arith.constant 0 : i32
    %c0_i32_1 = arith.constant 0 : i32
    return %c0_i32, %c0_i32_0 : i32, i32
  }
  func.func @transform_3(%arg0: i32) -> (i32, i32, i32) {
    %c0_i32 = arith.constant 0 : i32
    %c0_i32_0 = arith.constant 0 : i32
    %c0_i32_1 = arith.constant 0 : i32
    %c0_i32_2 = arith.constant 0 : i32
    return %c0_i32, %c0_i32_0, %c0_i32_1 : i32, i32, i32
  }
  func.func @transform_4(%arg0: i32) -> (i32, i32, i32) {
    %c0_i32 = arith.constant 0 : i32
    %c0_i32_0 = arith.constant 0 : i32
    %c0_i32_1 = arith.constant 0 : i32
    %c0_i32_2 = arith.constant 0 : i32
    return %c0_i32, %c0_i32_0, %c0_i32_1 : i32, i32, i32
  }
  func.func @transform_5(%arg0: i32) -> (i32, i32) {
    %c0_i32 = arith.constant 0 : i32
    %c0_i32_0 = arith.constant 0 : i32
    %c0_i32_1 = arith.constant 0 : i32
    return %c0_i32, %c0_i32_0 : i32, i32
  }
  func.func @transform_6(%arg0: i32) -> (i32, i32) {
    %c0_i32 = arith.constant 0 : i32
    %c0_i32_0 = arith.constant 0 : i32
    %c0_i32_1 = arith.constant 0 : i32
    return %c0_i32, %c0_i32_0 : i32, i32
  }
  func.func @transform_7(%arg0: i32) -> (i32, i32) {
    %c0_i32 = arith.constant 0 : i32
    %c0_i32_0 = arith.constant 0 : i32
    return %c0_i32, %arg0 : i32, i32
  }
}

</mosaic_0001>

<llo_original>
// kernel: mlp_forward.1
$region0: #{mlp_forward.1}
  #allocation0 [shape = 'u32[]', space=smem, size = 0x4, offset = 0x4, fixed_abs, tag = 'smem constant byte address 0x4 - core index']
  #allocation1 [shape = 'u32[144,128]{1,0:T(1,128)}', space=vmem, size = 0x12000, scoped, tag = 'internal scratch']
  #allocation2 [shape = 'f32[1,1]{1,0:T(1,128)S(1)}', space=vmem, size = 0x200, scoped, tag = 'scoped memory for mlp_forward.1']
  %s0 = inlined_call_operand.vmem [shape: f32[4,128], index: 0, kind: input, shape index: {}]
  %s1 = inlined_call_operand.vmem [shape: f32[32,4], index: 1, kind: input, shape index: {}]
  %s2 = inlined_call_operand.vmem [shape: f32[32,1], index: 2, kind: input, shape index: {}]
  %s3 = inlined_call_operand.vmem [shape: f32[2,32,32], index: 3, kind: input, shape index: {}]
  %s4 = inlined_call_operand.vmem [shape: f32[2,32,1], index: 4, kind: input, shape index: {}]
  %s5 = inlined_call_operand.vmem [shape: f32[1,32], index: 5, kind: input, shape index: {}]
  %s6 = inlined_call_operand.<no memory space> [shape: f32[1,1], index: 6, kind: input, shape index: {}]
  %s7 = inlined_call_operand.vmem [shape: f32[1,128], index: 7, kind: output, shape index: {}]
  %s8 = sld [smem:[#allocation0]]
  $region38: #{mlp_forward.1} parent=0
    _
  %s10 = ssub.s32 1, %s8
  %s11 = scalar_select 0, %s10, %s8
  %v12 = vstv %s6
  %13 = vst [vmem:[#allocation2] sm:$0x1] %v12
  // Predicated region
  $region2: #{mlp_forward.1} parent=0 // pred_check
    _
  $region3: #{mlp_forward.1} parent=0 // pred_check_branch
    %15 = sbr.rel (0) target = $region5
  $region4: #{mlp_forward.1} parent=0 // pred_region
    _
  $region5: #{mlp_forward.1} parent=0 // pred_fallthru
    _
  // Predicated region
  $region6: #{mlp_forward.1} parent=0 // pred_check
    _
  $region7: #{mlp_forward.1} parent=0 // pred_check_branch
    %17 = sbr.rel (0) target = $region9
  $region8: #{mlp_forward.1} parent=0 // pred_region
    _
  $region9: #{mlp_forward.1} parent=0 // pred_fallthru
    _
  // Predicated region
  $region10: #{mlp_forward.1} parent=0 // pred_check
    _
  $region11: #{mlp_forward.1} parent=0 // pred_check_branch
    %19 = sbr.rel (0) target = $region13
  $region12: #{mlp_forward.1} parent=0 // pred_region
    _
  $region13: #{mlp_forward.1} parent=0 // pred_fallthru
    _
  // Predicated region
  $region14: #{mlp_forward.1} parent=0 // pred_check
    _
  $region15: #{mlp_forward.1} parent=0 // pred_check_branch
    %21 = sbr.rel (0) target = $region17
  $region16: #{mlp_forward.1} parent=0 // pred_region
    _
  $region17: #{mlp_forward.1} parent=0 // pred_fallthru
    _
  // Predicated region
  $region18: #{mlp_forward.1} parent=0 // pred_check
    _
  $region19: #{mlp_forward.1} parent=0 // pred_check_branch
    %23 = sbr.rel (0) target = $region21
  $region20: #{mlp_forward.1} parent=0 // pred_region
    _
  $region21: #{mlp_forward.1} parent=0 // pred_fallthru
    _
  // Predicated region
  $region22: #{mlp_forward.1} parent=0 // pred_check
    _
  $region23: #{mlp_forward.1} parent=0 // pred_check_branch
    %25 = sbr.rel (0) target = $region25
  $region24: #{mlp_forward.1} parent=0 // pred_region
    _
  $region25: #{mlp_forward.1} parent=0 // pred_fallthru
    _
  // Predicated region
  $region26: #{mlp_forward.1} parent=0 // pred_check
    _
  $region27: #{mlp_forward.1} parent=0 // pred_check_branch
    %27 = sbr.rel (0) target = $region29
  $region28: #{mlp_forward.1} parent=0 // pred_region
    _
  $region29: #{mlp_forward.1} parent=0 // pred_fallthru
    _
  %v28 = vld [vmem:[%s1] sm:$0xff]
  %v29 = vld [vmem:[%s1 + $0x8] sm:$0xff]
  %v30 = vld [vmem:[%s1 + $0x10] sm:$0xff]
  %v31 = vld [vmem:[%s1 + $0x18] sm:$0xff]
  %v32 = vld [vmem:[%s0] sm:$0xf]
  %v33 = vld [vmem:[%s2] sm:$0xff]
  %v34 = vld [vmem:[%s2 + $0x8] sm:$0xff]
  %v35 = vld [vmem:[%s2 + $0x10] sm:$0xff]
  %v36 = vld [vmem:[%s2 + $0x18] sm:$0xff]
  %38 = vset.pattern.permute.xlu0 0
  %39 = vperm.xlu0 %38, %v33
  %v40 = vpop.permute.xlu0 %39
  %43 = vset.pattern.permute.xlu0 0
  %44 = vperm.xlu0 %43, %v34
  %v45 = vpop.permute.xlu0 %44
  %48 = vset.pattern.permute.xlu0 0
  %49 = vperm.xlu0 %48, %v35
  %v50 = vpop.permute.xlu0 %49
  %53 = vset.pattern.permute.xlu0 0
  %54 = vperm.xlu0 %53, %v36
  %v55 = vpop.permute.xlu0 %54
  %vm57 = vcmask 31744
  %v59 = vsel %vm57, %v28, 0
  %v62 = vsel %vm57, %v29, 0
  %v65 = vsel %vm57, %v30, 0
  %v68 = vsel %vm57, %v31, 0
  %vm70 = vcmask 1043456
  %v72 = vsel %vm70, %v32, 0
  %74 = vmatprep.subr.mxu0 0.0
  %75 = vmatpush1.msra.mxu0 %v72
  %76 = vmatprep.subr.mxu0 0.0
  %77 = vmatpush1.msra.mxu0 0.0
  %78 = vmatprep.subr.mxu0 0.0
  %79 = vmatpush1.msra.mxu0 0.0
  %80 = vmatprep.subr.mxu0 0.0
  %81 = vmatpush1.msra.mxu0 0.0
  %82 = vmatprep.subr.mxu0 0.0
  %83 = vmatpush1.msra.mxu0 0.0
  %84 = vmatprep.subr.mxu0 0.0
  %85 = vmatpush1.msra.mxu0 0.0
  %86 = vmatprep.subr.mxu0 0.0
  %87 = vmatpush1.msra.mxu0 0.0
  %88 = vmatprep.subr.mxu0 0.0
  %89 = vmatpush1.msra.mxu0 0.0
  %90 = vmatprep.subr.mxu0 0.0
  %91 = vmatpush1.msra.mxu0 0.0
  %92 = vmatprep.subr.mxu0 0.0
  %93 = vmatpush1.msra.mxu0 0.0
  %94 = vmatprep.subr.mxu0 0.0
  %95 = vmatpush1.msra.mxu0 0.0
  %96 = vmatprep.subr.mxu0 0.0
  %97 = vmatpush1.msra.mxu0 0.0
  %98 = vmatprep.subr.mxu0 0.0
  %99 = vmatpush1.msra.mxu0 0.0
  %100 = vmatprep.subr.mxu0 0.0
  %101 = vmatpush1.msra.mxu0 0.0
  %102 = vmatprep.subr.mxu0 0.0
  %103 = vmatpush1.msra.mxu0 0.0
  %104 = vmatprep.subr.mxu0 0.0
  %105 = vmatpush1.msra.mxu0 0.0
  %106 = vmatprep.subr.mxu0 0.0
  %107 = vmatpush1.msra.mxu0 0.0
  %108 = vmatprep.subr.mxu0 0.0
  %109 = vmatpush1.msra.mxu0 0.0
  %110 = vmatprep.subr.mxu0 0.0
  %111 = vmatpush1.msra.mxu0 0.0
  %112 = vmatprep.subr.mxu0 0.0
  %113 = vmatpush1.msra.mxu0 0.0
  %114 = vmatprep.subr.mxu0 0.0
  %115 = vmatpush1.msra.mxu0 0.0
  %116 = vmatprep.subr.mxu0 0.0
  %117 = vmatpush1.msra.mxu0 0.0
  %118 = vmatprep.subr.mxu0 0.0
  %119 = vmatpush1.msra.mxu0 0.0
  %120 = vmatprep.subr.mxu0 0.0
  %121 = vmatpush1.msra.mxu0 0.0
  %122 = vmatprep.subr.mxu0 0.0
  %123 = vmatpush1.msra.mxu0 0.0
  %124 = vmatprep.subr.mxu0 0.0
  %125 = vmatpush1.msra.mxu0 0.0
  %126 = vmatprep.subr.mxu0 0.0
  %127 = vmatpush1.msra.mxu0 0.0
  %128 = vmatprep.subr.mxu0 0.0
  %129 = vmatpush1.msra.mxu0 0.0
  %130 = vmatprep.subr.mxu0 0.0
  %131 = vmatpush1.msra.mxu0 0.0
  %132 = vmatprep.subr.mxu0 0.0
  %133 = vmatpush1.msra.mxu0 0.0
  %134 = vmatprep.subr.mxu0 0.0
  %135 = vmatpush1.msra.mxu0 0.0
  %136 = vmatprep.subr.mxu0 0.0
  %137 = vmatpush1.msra.mxu0 0.0
  %138 = vmatprep.mubr.f32.mxu0 0.0
  %139 = vmatmul.mubr.f32.gmra.mrb[0].mxu0 %v59
  %v140 = vpop.f32.mrb[0].mxu0
  %v141 = vadd.f32 %v40, %v140
  %v142 = vpop.f32.mrb[0].mxu0
  %143 = vmatprep.mubr.f32.mxu0 0.0
  %144 = vmatmul.mubr.f32.gmra.mrb[0].mxu0 %v62
  %v145 = vpop.f32.mrb[0].mxu0
  %v146 = vadd.f32 %v45, %v145
  %v147 = vpop.f32.mrb[0].mxu0
  %148 = vmatprep.mubr.f32.mxu0 0.0
  %149 = vmatmul.mubr.f32.gmra.mrb[0].mxu0 %v65
  %v150 = vpop.f32.mrb[0].mxu0
  %v151 = vadd.f32 %v50, %v150
  %v152 = vpop.f32.mrb[0].mxu0
  %153 = vmatprep.mubr.f32.mxu0 0.0
  %154 = vmatmul.mubr.f32.gmra.mrb[0].mxu0 %v68
  %v155 = vpop.f32.mrb[0].mxu0
  %v156 = vadd.f32 %v55, %v155
  %v157 = vpop.f32.mrb[0].mxu0
  %158 = vdwg.mxu0
  %v159 = vtanh.pop %v141
  %v160 = vtanh.pop %v146
  %v161 = vtanh.pop %v151
  %v162 = vtanh.pop %v156
  %v163 = vld [vmem:[%s3] sm:$0xff]
  %v164 = vld [vmem:[%s3 + $0x8] sm:$0xff]
  %v165 = vld [vmem:[%s3 + $0x10] sm:$0xff]
  %v166 = vld [vmem:[%s3 + $0x18] sm:$0xff]
  %v167 = vld [vmem:[%s4] sm:$0xff]
  %v168 = vld [vmem:[%s4 + $0x8] sm:$0xff]
  %v169 = vld [vmem:[%s4 + $0x10] sm:$0xff]
  %v170 = vld [vmem:[%s4 + $0x18] sm:$0xff]
  %172 = vset.pattern.permute.xlu0 0
  %173 = vperm.xlu0 %172, %v167
  %v174 = vpop.permute.xlu0 %173
  %177 = vset.pattern.permute.xlu0 0
  %178 = vperm.xlu0 %177, %v168
  %v179 = vpop.permute.xlu0 %178
  %182 = vset.pattern.permute.xlu0 0
  %183 = vperm.xlu0 %182, %v169
  %v184 = vpop.permute.xlu0 %183
  %187 = vset.pattern.permute.xlu0 0
  %188 = vperm.xlu0 %187, %v170
  %v189 = vpop.permute.xlu0 %188
  %vm191 = vcmask 261120
  %v193 = vsel %vm191, %v163, 0
  %v196 = vsel %vm191, %v164, 0
  %v199 = vsel %vm191, %v165, 0
  %v202 = vsel %vm191, %v166, 0
  %204 = vmatprep.subr.mxu0 0.0
  %205 = vmatpush1.msra.mxu0 %v159
  %206 = vmatprep.subr.mxu0 0.0
  %207 = vmatpush1.msra.mxu0 %v160
  %208 = vmatprep.subr.mxu0 0.0
  %209 = vmatpush1.msra.mxu0 %v161
  %210 = vmatprep.subr.mxu0 0.0
  %211 = vmatpush1.msra.mxu0 %v162
  %212 = vmatprep.subr.mxu0 0.0
  %213 = vmatpush1.msra.mxu0 0.0
  %214 = vmatprep.subr.mxu0 0.0
  %215 = vmatpush1.msra.mxu0 0.0
  %216 = vmatprep.subr.mxu0 0.0
  %217 = vmatpush1.msra.mxu0 0.0
  %218 = vmatprep.subr.mxu0 0.0
  %219 = vmatpush1.msra.mxu0 0.0
  %220 = vmatprep.subr.mxu0 0.0
  %221 = vmatpush1.msra.mxu0 0.0
  %222 = vmatprep.subr.mxu0 0.0
  %223 = vmatpush1.msra.mxu0 0.0
  %224 = vmatprep.subr.mxu0 0.0
  %225 = vmatpush1.msra.mxu0 0.0
  %226 = vmatprep.subr.mxu0 0.0
  %227 = vmatpush1.msra.mxu0 0.0
  %228 = vmatprep.subr.mxu0 0.0
  %229 = vmatpush1.msra.mxu0 0.0
  %230 = vmatprep.subr.mxu0 0.0
  %231 = vmatpush1.msra.mxu0 0.0
  %232 = vmatprep.subr.mxu0 0.0
  %233 = vmatpush1.msra.mxu0 0.0
  %234 = vmatprep.subr.mxu0 0.0
  %235 = vmatpush1.msra.mxu0 0.0
  %236 = vmatprep.subr.mxu0 0.0
  %237 = vmatpush1.msra.mxu0 0.0
  %238 = vmatprep.subr.mxu0 0.0
  %239 = vmatpush1.msra.mxu0 0.0
  %240 = vmatprep.subr.mxu0 0.0
  %241 = vmatpush1.msra.mxu0 0.0
  %242 = vmatprep.subr.mxu0 0.0
  %243 = vmatpush1.msra.mxu0 0.0
  %244 = vmatprep.subr.mxu0 0.0
  %245 = vmatpush1.msra.mxu0 0.0
  %246 = vmatprep.subr.mxu0 0.0
  %247 = vmatpush1.msra.mxu0 0.0
  %248 = vmatprep.subr.mxu0 0.0
  %249 = vmatpush1.msra.mxu0 0.0
  %250 = vmatprep.subr.mxu0 0.0
  %251 = vmatpush1.msra.mxu0 0.0
  %252 = vmatprep.subr.mxu0 0.0
  %253 = vmatpush1.msra.mxu0 0.0
  %254 = vmatprep.subr.mxu0 0.0
  %255 = vmatpush1.msra.mxu0 0.0
  %256 = vmatprep.subr.mxu0 0.0
  %257 = vmatpush1.msra.mxu0 0.0
  %258 = vmatprep.subr.mxu0 0.0
  %259 = vmatpush1.msra.mxu0 0.0
  %260 = vmatprep.subr.mxu0 0.0
  %261 = vmatpush1.msra.mxu0 0.0
  %262 = vmatprep.subr.mxu0 0.0
  %263 = vmatpush1.msra.mxu0 0.0
  %264 = vmatprep.subr.mxu0 0.0
  %265 = vmatpush1.msra.mxu0 0.0
  %266 = vmatprep.subr.mxu0 0.0
  %267 = vmatpush1.msra.mxu0 0.0
  %268 = vmatprep.mubr.f32.mxu0 0.0
  %269 = vmatmul.mubr.f32.gmra.mrb[0].mxu0 %v193
  %v270 = vpop.f32.mrb[0].mxu0
  %v271 = vadd.f32 %v174, %v270
  %v272 = vpop.f32.mrb[0].mxu0
  %273 = vmatprep.mubr.f32.mxu0 0.0
  %274 = vmatmul.mubr.f32.gmra.mrb[0].mxu0 %v196
  %v275 = vpop.f32.mrb[0].mxu0
  %v276 = vadd.f32 %v179, %v275
  %v277 = vpop.f32.mrb[0].mxu0
  %278 = vmatprep.mubr.f32.mxu0 0.0
  %279 = vmatmul.mubr.f32.gmra.mrb[0].mxu0 %v199
  %v280 = vpop.f32.mrb[0].mxu0
  %v281 = vadd.f32 %v184, %v280
  %v282 = vpop.f32.mrb[0].mxu0
  %283 = vmatprep.mubr.f32.mxu0 0.0
  %284 = vmatmul.mubr.f32.gmra.mrb[0].mxu0 %v202
  %v285 = vpop.f32.mrb[0].mxu0
  %v286 = vadd.f32 %v189, %v285
  %v287 = vpop.f32.mrb[0].mxu0
  %288 = vdwg.mxu0
  %v289 = vtanh.pop %v271
  %v290 = vtanh.pop %v276
  %v291 = vtanh.pop %v281
  %v292 = vtanh.pop %v286
  %s293 = scalar_lea.vmem %s3, 32
  %v294 = vld [vmem:[%s293] sm:$0xff]
  %v295 = vld [vmem:[%s293 + $0x8] sm:$0xff]
  %v296 = vld [vmem:[%s293 + $0x10] sm:$0xff]
  %v297 = vld [vmem:[%s293 + $0x18] sm:$0xff]
  %s298 = scalar_lea.vmem %s4, 32
  %v299 = vld [vmem:[%s298] sm:$0xff]
  %v300 = vld [vmem:[%s298 + $0x8] sm:$0xff]
  %v301 = vld [vmem:[%s298 + $0x10] sm:$0xff]
  %v302 = vld [vmem:[%s298 + $0x18] sm:$0xff]
  %304 = vset.pattern.permute.xlu0 0
  %305 = vperm.xlu0 %304, %v299
  %v306 = vpop.permute.xlu0 %305
  %309 = vset.pattern.permute.xlu0 0
  %310 = vperm.xlu0 %309, %v300
  %v311 = vpop.permute.xlu0 %310
  %314 = vset.pattern.permute.xlu0 0
  %315 = vperm.xlu0 %314, %v301
  %v316 = vpop.permute.xlu0 %315
  %319 = vset.pattern.permute.xlu0 0
  %320 = vperm.xlu0 %319, %v302
  %v321 = vpop.permute.xlu0 %320
  %v324 = vsel %vm191, %v294, 0
  %v327 = vsel %vm191, %v295, 0
  %v330 = vsel %vm191, %v296, 0
  %v333 = vsel %vm191, %v297, 0
  %335 = vmatprep.subr.mxu0 0.0
  %336 = vmatpush1.msra.mxu0 %v289
  %337 = vmatprep.subr.mxu0 0.0
  %338 = vmatpush1.msra.mxu0 %v290
  %339 = vmatprep.subr.mxu0 0.0
  %340 = vmatpush1.msra.mxu0 %v291
  %341 = vmatprep.subr.mxu0 0.0
  %342 = vmatpush1.msra.mxu0 %v292
  %343 = vmatprep.subr.mxu0 0.0
  %344 = vmatpush1.msra.mxu0 0.0
  %345 = vmatprep.subr.mxu0 0.0
  %346 = vmatpush1.msra.mxu0 0.0
  %347 = vmatprep.subr.mxu0 0.0
  %348 = vmatpush1.msra.mxu0 0.0
  %349 = vmatprep.subr.mxu0 0.0
  %350 = vmatpush1.msra.mxu0 0.0
  %351 = vmatprep.subr.mxu0 0.0
  %352 = vmatpush1.msra.mxu0 0.0
  %353 = vmatprep.subr.mxu0 0.0
  %354 = vmatpush1.msra.mxu0 0.0
  %355 = vmatprep.subr.mxu0 0.0
  %356 = vmatpush1.msra.mxu0 0.0
  %357 = vmatprep.subr.mxu0 0.0
  %358 = vmatpush1.msra.mxu0 0.0
  %359 = vmatprep.subr.mxu0 0.0
  %360 = vmatpush1.msra.mxu0 0.0
  %361 = vmatprep.subr.mxu0 0.0
  %362 = vmatpush1.msra.mxu0 0.0
  %363 = vmatprep.subr.mxu0 0.0
  %364 = vmatpush1.msra.mxu0 0.0
  %365 = vmatprep.subr.mxu0 0.0
  %366 = vmatpush1.msra.mxu0 0.0
  %367 = vmatprep.subr.mxu0 0.0
  %368 = vmatpush1.msra.mxu0 0.0
  %369 = vmatprep.subr.mxu0 0.0
  %370 = vmatpush1.msra.mxu0 0.0
  %371 = vmatprep.subr.mxu0 0.0
  %372 = vmatpush1.msra.mxu0 0.0
  %373 = vmatprep.subr.mxu0 0.0
  %374 = vmatpush1.msra.mxu0 0.0
  %375 = vmatprep.subr.mxu0 0.0
  %376 = vmatpush1.msra.mxu0 0.0
  %377 = vmatprep.subr.mxu0 0.0
  %378 = vmatpush1.msra.mxu0 0.0
  %379 = vmatprep.subr.mxu0 0.0
  %380 = vmatpush1.msra.mxu0 0.0
  %381 = vmatprep.subr.mxu0 0.0
  %382 = vmatpush1.msra.mxu0 0.0
  %383 = vmatprep.subr.mxu0 0.0
  %384 = vmatpush1.msra.mxu0 0.0
  %385 = vmatprep.subr.mxu0 0.0
  %386 = vmatpush1.msra.mxu0 0.0
  %387 = vmatprep.subr.mxu0 0.0
  %388 = vmatpush1.msra.mxu0 0.0
  %389 = vmatprep.subr.mxu0 0.0
  %390 = vmatpush1.msra.mxu0 0.0
  %391 = vmatprep.subr.mxu0 0.0
  %392 = vmatpush1.msra.mxu0 0.0
  %393 = vmatprep.subr.mxu0 0.0
  %394 = vmatpush1.msra.mxu0 0.0
  %395 = vmatprep.subr.mxu0 0.0
  %396 = vmatpush1.msra.mxu0 0.0
  %397 = vmatprep.subr.mxu0 0.0
  %398 = vmatpush1.msra.mxu0 0.0
  %399 = vmatprep.mubr.f32.mxu0 0.0
  %400 = vmatmul.mubr.f32.gmra.mrb[0].mxu0 %v324
  %v401 = vpop.f32.mrb[0].mxu0
  %v402 = vadd.f32 %v306, %v401
  %v403 = vpop.f32.mrb[0].mxu0
  %404 = vmatprep.mubr.f32.mxu0 0.0
  %405 = vmatmul.mubr.f32.gmra.mrb[0].mxu0 %v327
  %v406 = vpop.f32.mrb[0].mxu0
  %v407 = vadd.f32 %v311, %v406
  %v408 = vpop.f32.mrb[0].mxu0
  %409 = vmatprep.mubr.f32.mxu0 0.0
  %410 = vmatmul.mubr.f32.gmra.mrb[0].mxu0 %v330
  %v411 = vpop.f32.mrb[0].mxu0
  %v412 = vadd.f32 %v316, %v411
  %v413 = vpop.f32.mrb[0].mxu0
  %414 = vmatprep.mubr.f32.mxu0 0.0
  %415 = vmatmul.mubr.f32.gmra.mrb[0].mxu0 %v333
  %v416 = vpop.f32.mrb[0].mxu0
  %v417 = vadd.f32 %v321, %v416
  %v418 = vpop.f32.mrb[0].mxu0
  %419 = vdwg.mxu0
  %v420 = vtanh.pop %v402
  %v421 = vtanh.pop %v407
  %v422 = vtanh.pop %v412
  %v423 = vtanh.pop %v417
  %v424 = vld [vmem:[%s5] sm:$0x1]
  %v425 = vld [vmem:[#allocation2] sm:$0x1]
  %427 = vset.pattern.permute.xlu0 0
  %428 = vperm.xlu0 %427, %v425
  %v429 = vpop.permute.xlu0 %428
  %v431 = vlaneseq
  %v432 = vshrl.u32 %v431, 7
  %v433 = vsub.s32 0, %v432
  %v434 = vrot.slane %v429, %v433
  %v436 = vsel %vm191, %v424, 0
  %438 = vmatprep.subr.mxu0 0.0
  %439 = vmatpush1.msra.mxu0 %v420
  %440 = vmatprep.subr.mxu0 0.0
  %441 = vmatpush1.msra.mxu0 %v421
  %442 = vmatprep.subr.mxu0 0.0
  %443 = vmatpush1.msra.mxu0 %v422
  %444 = vmatprep.subr.mxu0 0.0
  %445 = vmatpush1.msra.mxu0 %v423
  %446 = vmatprep.subr.mxu0 0.0
  %447 = vmatpush1.msra.mxu0 0.0
  %448 = vmatprep.subr.mxu0 0.0
  %449 = vmatpush1.msra.mxu0 0.0
  %450 = vmatprep.subr.mxu0 0.0
  %451 = vmatpush1.msra.mxu0 0.0
  %452 = vmatprep.subr.mxu0 0.0
  %453 = vmatpush1.msra.mxu0 0.0
  %454 = vmatprep.subr.mxu0 0.0
  %455 = vmatpush1.msra.mxu0 0.0
  %456 = vmatprep.subr.mxu0 0.0
  %457 = vmatpush1.msra.mxu0 0.0
  %458 = vmatprep.subr.mxu0 0.0
  %459 = vmatpush1.msra.mxu0 0.0
  %460 = vmatprep.subr.mxu0 0.0
  %461 = vmatpush1.msra.mxu0 0.0
  %462 = vmatprep.subr.mxu0 0.0
  %463 = vmatpush1.msra.mxu0 0.0
  %464 = vmatprep.subr.mxu0 0.0
  %465 = vmatpush1.msra.mxu0 0.0
  %466 = vmatprep.subr.mxu0 0.0
  %467 = vmatpush1.msra.mxu0 0.0
  %468 = vmatprep.subr.mxu0 0.0
  %469 = vmatpush1.msra.mxu0 0.0
  %470 = vmatprep.subr.mxu0 0.0
  %471 = vmatpush1.msra.mxu0 0.0
  %472 = vmatprep.subr.mxu0 0.0
  %473 = vmatpush1.msra.mxu0 0.0
  %474 = vmatprep.subr.mxu0 0.0
  %475 = vmatpush1.msra.mxu0 0.0
  %476 = vmatprep.subr.mxu0 0.0
  %477 = vmatpush1.msra.mxu0 0.0
  %478 = vmatprep.subr.mxu0 0.0
  %479 = vmatpush1.msra.mxu0 0.0
  %480 = vmatprep.subr.mxu0 0.0
  %481 = vmatpush1.msra.mxu0 0.0
  %482 = vmatprep.subr.mxu0 0.0
  %483 = vmatpush1.msra.mxu0 0.0
  %484 = vmatprep.subr.mxu0 0.0
  %485 = vmatpush1.msra.mxu0 0.0
  %486 = vmatprep.subr.mxu0 0.0
  %487 = vmatpush1.msra.mxu0 0.0
  %488 = vmatprep.subr.mxu0 0.0
  %489 = vmatpush1.msra.mxu0 0.0
  %490 = vmatprep.subr.mxu0 0.0
  %491 = vmatpush1.msra.mxu0 0.0
  %492 = vmatprep.subr.mxu0 0.0
  %493 = vmatpush1.msra.mxu0 0.0
  %494 = vmatprep.subr.mxu0 0.0
  %495 = vmatpush1.msra.mxu0 0.0
  %496 = vmatprep.subr.mxu0 0.0
  %497 = vmatpush1.msra.mxu0 0.0
  %498 = vmatprep.subr.mxu0 0.0
  %499 = vmatpush1.msra.mxu0 0.0
  %500 = vmatprep.subr.mxu0 0.0
  %501 = vmatpush1.msra.mxu0 0.0
  %502 = vmatprep.mubr.f32.mxu0 0.0
  %503 = vmatmul.mubr.f32.gmra.mrb[0].mxu0 %v436
  %v504 = vpop.f32.mrb[0].mxu0
  %v505 = vadd.f32 %v434, %v504
  %v506 = vpop.f32.mrb[0].mxu0
  %507 = vdwg.mxu0
  %508 = vst [vmem:[%s7] sm:$0x1] %v505
  // Predicated region
  $region30: #{mlp_forward.1} parent=0 // pred_check
    _
  $region31: #{mlp_forward.1} parent=0 // pred_check_branch
    %510 = sbr.rel (0) target = $region33
  $region32: #{mlp_forward.1} parent=0 // pred_region
    _
  $region33: #{mlp_forward.1} parent=0 // pred_fallthru
    _
  // Predicated region
  $region34: #{mlp_forward.1} parent=0 // pred_check
    _
  $region35: #{mlp_forward.1} parent=0 // pred_check_branch
    %512 = sbr.rel (0) target = $region37
  $region36: #{mlp_forward.1} parent=0 // pred_region
    _
  $region37: #{mlp_forward.1} parent=0 // pred_fallthru
    _

</llo_original>
